<compile_context>
chip_gen: v7x
topology: tpu7x:2x2x1
jax: 0.10.0
libtpu: 0.0.40
codegen_flags: <defaults>
</compile_context>

<pallas_src>
import functools

import jax
import jax.numpy as jnp
from jax import lax
from jax.experimental import pallas as pl
from jax.experimental.pallas import tpu as pltpu


# ---------------------------------------------------------------------------
# Tile-size helper: largest multiple of `align` that divides `dim` and is
# <= target; falls back to the full dim (full-dim blocks are always legal).
# ---------------------------------------------------------------------------
def _pick_tile(dim, target, align):
    if dim <= target:
        return dim
    t = (target // align) * align
    while t >= align:
        if dim % t == 0:
            return t
        t -= align
    return dim


def _itemsize(dt):
    return jnp.dtype(dt).itemsize


# ---------------------------------------------------------------------------
# Kernel 1: tiled fused linear  y = x @ w + b  (bf16 MXU, f32 accumulation).
# ---------------------------------------------------------------------------
def _linear_kernel(x_ref, w_ref, b_ref, o_ref, acc_ref):
    k = pl.program_id(2)

    @pl.when(k == 0)
    def _init():
        acc_ref[...] = jnp.zeros_like(acc_ref)

    acc_ref[...] += jnp.dot(
        x_ref[...].astype(jnp.bfloat16),
        w_ref[...].astype(jnp.bfloat16),
        preferred_element_type=jnp.float32,
    )

    @pl.when(k == pl.num_programs(2) - 1)
    def _finalize():
        # Bias added once, only on the last K step.
        o_ref[...] = (acc_ref[...] + b_ref[...]).astype(o_ref.dtype)


def linear_tiled(x2d, w_t, b_row, out_dtype=jnp.float32,
                 tm_target=256, tn_target=512, tk_target=512):
    """y = x2d @ w_t + b_row   (w_t already transposed to (K, N))."""
    M, K = x2d.shape
    K2, N = w_t.shape
    assert K == K2
    assert b_row.shape == (1, N)

    tm = _pick_tile(M, tm_target, 8)      # sublane axis
    tn = _pick_tile(N, tn_target, 128)    # lane axis
    tk = _pick_tile(K, tk_target, 128)    # lane axis of x / sublane axis of w
    grid = (M // tm, N // tn, K // tk)

    vmem_est = (
        2 * (tm * tk * _itemsize(x2d.dtype)
             + tk * tn * _itemsize(w_t.dtype)
             + tn * _itemsize(b_row.dtype))
        + 2 * tm * tn * _itemsize(out_dtype)
        + tm * tn * 4  # f32 accumulator scratch
    )
    vmem_limit = int(min(64 * 2**20, max(8 * 2**20, 2 * vmem_est)))

    return pl.pallas_call(
        _linear_kernel,
        grid=grid,
        out_shape=jax.ShapeDtypeStruct((M, N), out_dtype),
        in_specs=[
            pl.BlockSpec((tm, tk), lambda i, j, k: (i, k)),
            pl.BlockSpec((tk, tn), lambda i, j, k: (k, j)),
            pl.BlockSpec((1, tn), lambda i, j, k: (0, j)),
        ],
        out_specs=pl.BlockSpec((tm, tn), lambda i, j, k: (i, j)),
        scratch_shapes=[pltpu.VMEM((tm, tn), jnp.float32)],
        compiler_params=pltpu.CompilerParams(
            dimension_semantics=("parallel", "parallel", "arbitrary"),
            vmem_limit_bytes=vmem_limit,
        ),
    )(x2d, w_t, b_row)


# ---------------------------------------------------------------------------
# Kernel 2: per-batch multi-head attention with the output projection fused in.
#   input  qkv block: (1, T, 3E)  [q | k | v] columns, bf16
#   output          : (1, T, E)   lane-dense, f32
# ---------------------------------------------------------------------------
def _attn_outproj_kernel(qkv_ref, wo_ref, bo_ref, o_ref, *,
                         num_heads, head_dim, scaling):
    T = qkv_ref.shape[1]
    E = num_heads * head_dim
    qkv = qkv_ref[0]            # (T, 3E) bf16
    wo = wo_ref[...]            # (E, E)  bf16  (Wo^T)

    acc = jnp.zeros((T, E), jnp.float32)
    # Static unroll over heads: head_dim < 128 here, so a per-head grid axis
    # would force non-lane-aligned blocks; static slices of the lane-dense
    # block are cheap layout plumbing for moderate num_heads.
    for h in range(num_heads):
        lo = h * head_dim
        hi = lo + head_dim
        q = qkv[:, lo:hi]                    # (T, D) bf16
        k = qkv[:, E + lo:E + hi]            # (T, D) bf16
        v = qkv[:, 2 * E + lo:2 * E + hi]    # (T, D) bf16

        # scores = (q k^T) * scaling  (contraction over head_dim, f32 acc)
        s = lax.dot_general(
            q, k, (((1,), (1,)), ((), ())),
            preferred_element_type=jnp.float32) * scaling       # (T, T) f32

        # softmax (max-subtracted, f32); reciprocal goes to the EUP slot.
        m = jnp.max(s, axis=-1, keepdims=True)
        p = jnp.exp(s - m)
        denom = jnp.sum(p, axis=-1, keepdims=True)
        p = p * pl.reciprocal(denom, approx=True)

        attn_h = jnp.dot(p.astype(jnp.bfloat16), v,
                         preferred_element_type=jnp.float32)     # (T, D) f32

        # Fused output projection: out += attn_h @ Wo^T[h*D:(h+1)*D, :]
        acc = acc + jnp.dot(attn_h.astype(jnp.bfloat16), wo[lo:hi, :],
                            preferred_element_type=jnp.float32)  # (T, E)

    o_ref[0] = (acc + bo_ref[...]).astype(o_ref.dtype)


def attention_out_proj(qkv3d, wo_t, bo_row, *, num_heads, head_dim,
                       scaling, out_dtype):
    B, T, E3 = qkv3d.shape
    E = num_heads * head_dim
    assert E3 == 3 * E

    vmem_est = (
        2 * T * E3 * _itemsize(qkv3d.dtype)    # double-buffered qkv block
        + E * E * _itemsize(wo_t.dtype)        # Wo (block index constant -> resident)
        + E * _itemsize(bo_row.dtype)
        + 2 * T * E * _itemsize(out_dtype)     # double-buffered output block
        + T * T * 4 + 2 * T * E * 4            # f32 scores + accumulators
    )
    vmem_limit = int(min(64 * 2**20, max(8 * 2**20, 2 * vmem_est)))

    kernel = functools.partial(
        _attn_outproj_kernel,
        num_heads=num_heads, head_dim=head_dim, scaling=scaling)

    # TODO(synk): for long sequences, switch to a flash-style online softmax
    # with a KV grid axis so the (T, S) score block never materializes.
    return pl.pallas_call(
        kernel,
        grid=(B,),
        out_shape=jax.ShapeDtypeStruct((B, T, E), out_dtype),
        in_specs=[
            pl.BlockSpec((1, T, E3), lambda b: (b, 0, 0)),
            pl.BlockSpec((E, E), lambda b: (0, 0)),
            pl.BlockSpec((1, E), lambda b: (0, 0)),
        ],
        out_specs=pl.BlockSpec((1, T, E), lambda b: (b, 0, 0)),
        compiler_params=pltpu.CompilerParams(
            dimension_semantics=("parallel",),
            vmem_limit_bytes=vmem_limit,
        ),
    )(qkv3d, wo_t, bo_row)


# ---------------------------------------------------------------------------
# Python wrapper reproducing GraphAttention.forward (self-attention path).
# ---------------------------------------------------------------------------
def graph_attention_forward(hidden_states, params, num_heads):
    B, T, E = hidden_states.shape
    D = E // num_heads
    scaling = float(D) ** -0.5

    x2d = hidden_states.reshape(B * T, E)

    # PyTorch nn.Linear: y = x @ W.T + b  (W stored as (out, in)).
    # Fuse the three projections into one (E, 3E) weight / (1, 3E) bias.
    w_qkv = jnp.concatenate(
        [params["wq"].T, params["wk"].T, params["wv"].T], axis=1
    ).astype(jnp.bfloat16)                                        # (E, 3E)
    b_qkv = jnp.concatenate(
        [params["bq"], params["bk"], params["bv"]])[None, :]      # (1, 3E)

    qkv = linear_tiled(x2d, w_qkv, b_qkv, out_dtype=jnp.bfloat16)  # (B*T, 3E)
    qkv3d = qkv.reshape(B, T, 3 * E)          # contiguous reshape, no transpose

    wo_t = params["wo"].T.astype(jnp.bfloat16)                    # (E, E)
    bo_row = params["bo"][None, :]                                # (1, E)

    out = attention_out_proj(
        qkv3d, wo_t, bo_row,
        num_heads=num_heads, head_dim=D, scaling=scaling,
        out_dtype=hidden_states.dtype)

    # matches torch return: (attn_output, attn_weights_reshaped, past_key_value)
    return out, None, None


# ---------------------------------------------------------------------------
# Deterministic parameter init (mimics nn.Linear's uniform(-1/sqrt(fan_in))).
# ---------------------------------------------------------------------------
def init_params(key, embed_dim):
    bound = 1.0 / (embed_dim ** 0.5)
    names = ["wq", "bq", "wk", "bk", "wv", "bv", "wo", "bo"]
    keys = jax.random.split(key, len(names))
    params = {}
    for name, k in zip(names, keys):
        if name.startswith("w"):
            params[name] = jax.random.uniform(
                k, (embed_dim, embed_dim), jnp.float32, -bound, bound)
        else:
            params[name] = jax.random.uniform(
                k, (embed_dim,), jnp.float32, -bound, bound)
    return params


if __name__ == "__main__":
    B, T, E, H = 2, 8, 32, 4   # batch, seq, embed_dim, num_heads (head_dim=8)

    root = jax.random.PRNGKey(0)
    k_params, k_x = jax.random.split(root)
    params = init_params(k_params, E)
    hidden_states = jax.random.normal(k_x, (B, T, E), jnp.float32)

    fwd = jax.jit(functools.partial(graph_attention_forward, num_heads=H))
    out, attn_w, past_kv = fwd(hidden_states, params)
    out = jax.block_until_ready(out)

    assert out.shape == (B, T, E)
    assert attn_w is None and past_kv is None
    assert bool(jnp.all(jnp.isfinite(out)))
    print("KERNEL_OK")
</pallas_src>

<mosaic_0001>
module attributes {stable_mosaic.version = 11 : i64} {
  func.func @_linear_kernel(%arg0: i32, %arg1: i32, %arg2: i32, %arg3: memref<16x32xf32, #tpu.memory_space<vmem>>, %arg4: memref<32x96xbf16, #tpu.memory_space<vmem>>, %arg5: memref<1x96xf32, #tpu.memory_space<vmem>>, %arg6: memref<16x96xbf16, #tpu.memory_space<vmem>>, %arg7: memref<16x96xf32, #tpu.memory_space<vmem>>) attributes {dimension_semantics = [#tpu.dimension_semantics<parallel>, #tpu.dimension_semantics<parallel>, #tpu.dimension_semantics<arbitrary>], iteration_bounds = array<i64: 1, 1, 1>, scalar_prefetch = 0 : i64, scratch_operands = 1 : i64, tpu.core_type = #tpu.core_type<tc>, window_params = [{transform_indices = @transform_0, window_bounds = array<i64: 16, 32>}, {transform_indices = @transform_1, window_bounds = array<i64: 32, 96>}, {transform_indices = @transform_2, window_bounds = array<i64: 1, 96>}, {transform_indices = @transform_3, window_bounds = array<i64: 16, 96>}]} {
    %c0_i32 = arith.constant 0 : i32
    %0 = arith.cmpi eq, %arg2, %c0_i32 : i32
    %1 = arith.extui %0 : i1 to i32
    %c0_i32_0 = arith.constant 0 : i32
    %2 = arith.cmpi ne, %1, %c0_i32_0 : i32
    scf.if %2 {
      %cst_10 = arith.constant 0.000000e+00 : f32
      %13 = vector.broadcast %cst_10 : f32 to vector<16x96xf32>
      %c0_11 = arith.constant 0 : index
      %c0_12 = arith.constant 0 : index
      %14 = vector.load %arg7[%c0_11, %c0_12] : memref<16x96xf32, #tpu.memory_space<vmem>>, vector<16x96xf32>
      tpu.vector_store %arg7[%c0_11, %c0_12], %13 {strides = array<i32>} : memref<16x96xf32, #tpu.memory_space<vmem>>, vector<16x96xf32>,
    } else {
    }
    %c0 = arith.constant 0 : index
    %c0_1 = arith.constant 0 : index
    %3 = vector.load %arg7[%c0, %c0_1] : memref<16x96xf32, #tpu.memory_space<vmem>>, vector<16x96xf32>
    %c0_2 = arith.constant 0 : index
    %c0_3 = arith.constant 0 : index
    %4 = vector.load %arg3[%c0_2, %c0_3] : memref<16x32xf32, #tpu.memory_space<vmem>>, vector<16x32xf32>
    %5 = arith.truncf %4 : vector<16x32xf32> to vector<16x32xbf16>
    %c0_4 = arith.constant 0 : index
    %c0_5 = arith.constant 0 : index
    %6 = vector.load %arg4[%c0_4, %c0_5] : memref<32x96xbf16, #tpu.memory_space<vmem>>, vector<32x96xbf16>
    %cst = arith.constant dense<0.000000e+00> : vector<16x96xf32>
    %7 = tpu.matmul %5, %6, %cst {dimension_numbers = #tpu.dot_dimension_numbers<[1], [0], [0], [1], [0, 0, 1, 1], [], []>} : vector<16x32xbf16>, vector<32x96xbf16>, vector<16x96xf32> -> vector<16x96xf32>
    %8 = arith.addf %3, %7 : vector<16x96xf32>
    %c0_6 = arith.constant 0 : index
    %c0_7 = arith.constant 0 : index
    %9 = vector.load %arg7[%c0_6, %c0_7] : memref<16x96xf32, #tpu.memory_space<vmem>>, vector<16x96xf32>
    tpu.vector_store %arg7[%c0_6, %c0_7], %8 {strides = array<i32>} : memref<16x96xf32, #tpu.memory_space<vmem>>, vector<16x96xf32>,
    %c0_i32_8 = arith.constant 0 : i32
    %10 = arith.cmpi eq, %arg2, %c0_i32_8 : i32
    %11 = arith.extui %10 : i1 to i32
    %c0_i32_9 = arith.constant 0 : i32
    %12 = arith.cmpi ne, %11, %c0_i32_9 : i32
    scf.if %12 {
      %c0_10 = arith.constant 0 : index
      %c0_11 = arith.constant 0 : index
      %13 = vector.load %arg7[%c0_10, %c0_11] : memref<16x96xf32, #tpu.memory_space<vmem>>, vector<16x96xf32>
      %c0_12 = arith.constant 0 : index
      %c0_13 = arith.constant 0 : index
      %14 = vector.load %arg5[%c0_12, %c0_13] : memref<1x96xf32, #tpu.memory_space<vmem>>, vector<1x96xf32>
      %15 = vector.broadcast %14 : vector<1x96xf32> to vector<16x96xf32>
      %16 = arith.addf %13, %15 : vector<16x96xf32>
      %17 = arith.truncf %16 : vector<16x96xf32> to vector<16x96xbf16>
      %c0_14 = arith.constant 0 : index
      %c0_15 = arith.constant 0 : index
      %18 = vector.load %arg6[%c0_14, %c0_15] : memref<16x96xbf16, #tpu.memory_space<vmem>>, vector<16x96xbf16>
      tpu.vector_store %arg6[%c0_14, %c0_15], %17 {strides = array<i32>} : memref<16x96xbf16, #tpu.memory_space<vmem>>, vector<16x96xbf16>,
    } else {
    }
    return
  }
  func.func @transform_0(%arg0: i32, %arg1: i32, %arg2: i32) -> (i32, i32) {
    %c0_i32 = arith.constant 0 : i32
    return %arg0, %arg2 : i32, i32
  }
  func.func @transform_1(%arg0: i32, %arg1: i32, %arg2: i32) -> (i32, i32) {
    %c0_i32 = arith.constant 0 : i32
    return %arg2, %arg1 : i32, i32
  }
  func.func @transform_2(%arg0: i32, %arg1: i32, %arg2: i32) -> (i32, i32) {
    %c0_i32 = arith.constant 0 : i32
    %c0_i32_0 = arith.constant 0 : i32
    return %c0_i32, %arg1 : i32, i32
  }
  func.func @transform_3(%arg0: i32, %arg1: i32, %arg2: i32) -> (i32, i32) {
    %c0_i32 = arith.constant 0 : i32
    return %arg0, %arg1 : i32, i32
  }
}

module attributes {stable_mosaic.version = 11 : i64} {
  func.func @_attn_outproj_kernel(%arg0: i32, %arg1: memref<1x8x96xbf16, #tpu.memory_space<vmem>>, %arg2: memref<32x32xbf16, #tpu.memory_space<vmem>>, %arg3: memref<1x32xf32, #tpu.memory_space<vmem>>, %arg4: memref<1x8x32xf32, #tpu.memory_space<vmem>>) attributes {dimension_semantics = [#tpu.dimension_semantics<parallel>], iteration_bounds = array<i64: 2>, scalar_prefetch = 0 : i64, scratch_operands = 0 : i64, tpu.core_type = #tpu.core_type<tc>, window_params = [{transform_indices = @transform_0, window_bounds = array<i64: 1, 8, 96>}, {pipeline_mode = #tpu.pipeline_mode<synchronous>, transform_indices = @transform_1, window_bounds = array<i64: 32, 32>}, {pipeline_mode = #tpu.pipeline_mode<synchronous>, transform_indices = @transform_2, window_bounds = array<i64: 1, 32>}, {transform_indices = @transform_3, window_bounds = array<i64: 1, 8, 32>}]} {
    %c0 = arith.constant 0 : index
    %c0_0 = arith.constant 0 : index
    %c0_1 = arith.constant 0 : index
    %0 = vector.load %arg1[%c0, %c0_0, %c0_1] : memref<1x8x96xbf16, #tpu.memory_space<vmem>>, vector<1x8x96xbf16>
    %1 = vector.shape_cast %0 : vector<1x8x96xbf16> to vector<8x96xbf16>
    %c0_2 = arith.constant 0 : index
    %c0_3 = arith.constant 0 : index
    %2 = vector.load %arg2[%c0_2, %c0_3] : memref<32x32xbf16, #tpu.memory_space<vmem>>, vector<32x32xbf16>
    %cst = arith.constant 0.000000e+00 : f32
    %3 = vector.broadcast %cst : f32 to vector<8x32xf32>
    %4 = vector.extract_strided_slice %1 {offsets = [0, 0], sizes = [8, 8], strides = [1, 1]} : vector<8x96xbf16> to vector<8x8xbf16>
    %5 = vector.extract_strided_slice %1 {offsets = [0, 32], sizes = [8, 8], strides = [1, 1]} : vector<8x96xbf16> to vector<8x8xbf16>
    %6 = vector.extract_strided_slice %1 {offsets = [0, 64], sizes = [8, 8], strides = [1, 1]} : vector<8x96xbf16> to vector<8x8xbf16>
    %cst_4 = arith.constant dense<0.000000e+00> : vector<8x8xf32>
    %7 = tpu.matmul %4, %5, %cst_4 {dimension_numbers = #tpu.dot_dimension_numbers<[1], [1], [0], [0], [0, 0, 1, 0], [], []>} : vector<8x8xbf16>, vector<8x8xbf16>, vector<8x8xf32> -> vector<8x8xf32>
    %cst_5 = arith.constant 0.353553385 : f32
    %8 = vector.broadcast %cst_5 : f32 to vector<8x8xf32>
    %9 = arith.mulf %7, %8 : vector<8x8xf32>
    %cst_6 = arith.constant dense<0xFF800000> : vector<8xf32>
    %10 = vector.multi_reduction <maximumf>, %9, %cst_6 [1] : vector<8x8xf32> to vector<8xf32>
    %11 = vector.shape_cast %10 : vector<8xf32> to vector<8x1xf32>
    %12 = vector.broadcast %11 : vector<8x1xf32> to vector<8x8xf32>
    %13 = arith.subf %9, %12 : vector<8x8xf32>
    %14 = math.exp %13 : vector<8x8xf32>
    %cst_7 = arith.constant dense<0.000000e+00> : vector<8xf32>
    %15 = vector.multi_reduction <add>, %14, %cst_7 [1] : vector<8x8xf32> to vector<8xf32>
    %16 = vector.shape_cast %15 : vector<8xf32> to vector<8x1xf32>
    %17 = tpu.reciprocal %16 {approx = true} : vector<8x1xf32> -> vector<8x1xf32>
    %18 = vector.broadcast %17 : vector<8x1xf32> to vector<8x8xf32>
    %19 = arith.mulf %14, %18 : vector<8x8xf32>
    %20 = arith.truncf %19 : vector<8x8xf32> to vector<8x8xbf16>
    %cst_8 = arith.constant dense<0.000000e+00> : vector<8x8xf32>
    %21 = tpu.matmul %20, %6, %cst_8 {dimension_numbers = #tpu.dot_dimension_numbers<[1], [0], [0], [1], [0, 0, 1, 1], [], []>} : vector<8x8xbf16>, vector<8x8xbf16>, vector<8x8xf32> -> vector<8x8xf32>
    %22 = arith.truncf %21 : vector<8x8xf32> to vector<8x8xbf16>
    %23 = vector.extract_strided_slice %2 {offsets = [0, 0], sizes = [8, 32], strides = [1, 1]} : vector<32x32xbf16> to vector<8x32xbf16>
    %cst_9 = arith.constant dense<0.000000e+00> : vector<8x32xf32>
    %24 = tpu.matmul %22, %23, %cst_9 {dimension_numbers = #tpu.dot_dimension_numbers<[1], [0], [0], [1], [0, 0, 1, 1], [], []>} : vector<8x8xbf16>, vector<8x32xbf16>, vector<8x32xf32> -> vector<8x32xf32>
    %25 = arith.addf %3, %24 : vector<8x32xf32>
    %26 = vector.extract_strided_slice %1 {offsets = [0, 8], sizes = [8, 8], strides = [1, 1]} : vector<8x96xbf16> to vector<8x8xbf16>
    %27 = vector.extract_strided_slice %1 {offsets = [0, 40], sizes = [8, 8], strides = [1, 1]} : vector<8x96xbf16> to vector<8x8xbf16>
    %28 = vector.extract_strided_slice %1 {offsets = [0, 72], sizes = [8, 8], strides = [1, 1]} : vector<8x96xbf16> to vector<8x8xbf16>
    %cst_10 = arith.constant dense<0.000000e+00> : vector<8x8xf32>
    %29 = tpu.matmul %26, %27, %cst_10 {dimension_numbers = #tpu.dot_dimension_numbers<[1], [1], [0], [0], [0, 0, 1, 0], [], []>} : vector<8x8xbf16>, vector<8x8xbf16>, vector<8x8xf32> -> vector<8x8xf32>
    %cst_11 = arith.constant 0.353553385 : f32
    %30 = vector.broadcast %cst_11 : f32 to vector<8x8xf32>
    %31 = arith.mulf %29, %30 : vector<8x8xf32>
    %cst_12 = arith.constant dense<0xFF800000> : vector<8xf32>
    %32 = vector.multi_reduction <maximumf>, %31, %cst_12 [1] : vector<8x8xf32> to vector<8xf32>
    %33 = vector.shape_cast %32 : vector<8xf32> to vector<8x1xf32>
    %34 = vector.broadcast %33 : vector<8x1xf32> to vector<8x8xf32>
    %35 = arith.subf %31, %34 : vector<8x8xf32>
    %36 = math.exp %35 : vector<8x8xf32>
    %cst_13 = arith.constant dense<0.000000e+00> : vector<8xf32>
    %37 = vector.multi_reduction <add>, %36, %cst_13 [1] : vector<8x8xf32> to vector<8xf32>
    %38 = vector.shape_cast %37 : vector<8xf32> to vector<8x1xf32>
    %39 = tpu.reciprocal %38 {approx = true} : vector<8x1xf32> -> vector<8x1xf32>
    %40 = vector.broadcast %39 : vector<8x1xf32> to vector<8x8xf32>
    %41 = arith.mulf %36, %40 : vector<8x8xf32>
    %42 = arith.truncf %41 : vector<8x8xf32> to vector<8x8xbf16>
    %cst_14 = arith.constant dense<0.000000e+00> : vector<8x8xf32>
    %43 = tpu.matmul %42, %28, %cst_14 {dimension_numbers = #tpu.dot_dimension_numbers<[1], [0], [0], [1], [0, 0, 1, 1], [], []>} : vector<8x8xbf16>, vector<8x8xbf16>, vector<8x8xf32> -> vector<8x8xf32>
    %44 = arith.truncf %43 : vector<8x8xf32> to vector<8x8xbf16>
    %45 = vector.extract_strided_slice %2 {offsets = [8, 0], sizes = [8, 32], strides = [1, 1]} : vector<32x32xbf16> to vector<8x32xbf16>
    %cst_15 = arith.constant dense<0.000000e+00> : vector<8x32xf32>
    %46 = tpu.matmul %44, %45, %cst_15 {dimension_numbers = #tpu.dot_dimension_numbers<[1], [0], [0], [1], [0, 0, 1, 1], [], []>} : vector<8x8xbf16>, vector<8x32xbf16>, vector<8x32xf32> -> vector<8x32xf32>
    %47 = arith.addf %25, %46 : vector<8x32xf32>
    %48 = vector.extract_strided_slice %1 {offsets = [0, 16], sizes = [8, 8], strides = [1, 1]} : vector<8x96xbf16> to vector<8x8xbf16>
    %49 = vector.extract_strided_slice %1 {offsets = [0, 48], sizes = [8, 8], strides = [1, 1]} : vector<8x96xbf16> to vector<8x8xbf16>
    %50 = vector.extract_strided_slice %1 {offsets = [0, 80], sizes = [8, 8], strides = [1, 1]} : vector<8x96xbf16> to vector<8x8xbf16>
    %cst_16 = arith.constant dense<0.000000e+00> : vector<8x8xf32>
    %51 = tpu.matmul %48, %49, %cst_16 {dimension_numbers = #tpu.dot_dimension_numbers<[1], [1], [0], [0], [0, 0, 1, 0], [], []>} : vector<8x8xbf16>, vector<8x8xbf16>, vector<8x8xf32> -> vector<8x8xf32>
    %cst_17 = arith.constant 0.353553385 : f32
    %52 = vector.broadcast %cst_17 : f32 to vector<8x8xf32>
    %53 = arith.mulf %51, %52 : vector<8x8xf32>
    %cst_18 = arith.constant dense<0xFF800000> : vector<8xf32>
    %54 = vector.multi_reduction <maximumf>, %53, %cst_18 [1] : vector<8x8xf32> to vector<8xf32>
    %55 = vector.shape_cast %54 : vector<8xf32> to vector<8x1xf32>
    %56 = vector.broadcast %55 : vector<8x1xf32> to vector<8x8xf32>
    %57 = arith.subf %53, %56 : vector<8x8xf32>
    %58 = math.exp %57 : vector<8x8xf32>
    %cst_19 = arith.constant dense<0.000000e+00> : vector<8xf32>
    %59 = vector.multi_reduction <add>, %58, %cst_19 [1] : vector<8x8xf32> to vector<8xf32>
    %60 = vector.shape_cast %59 : vector<8xf32> to vector<8x1xf32>
    %61 = tpu.reciprocal %60 {approx = true} : vector<8x1xf32> -> vector<8x1xf32>
    %62 = vector.broadcast %61 : vector<8x1xf32> to vector<8x8xf32>
    %63 = arith.mulf %58, %62 : vector<8x8xf32>
    %64 = arith.truncf %63 : vector<8x8xf32> to vector<8x8xbf16>
    %cst_20 = arith.constant dense<0.000000e+00> : vector<8x8xf32>
    %65 = tpu.matmul %64, %50, %cst_20 {dimension_numbers = #tpu.dot_dimension_numbers<[1], [0], [0], [1], [0, 0, 1, 1], [], []>} : vector<8x8xbf16>, vector<8x8xbf16>, vector<8x8xf32> -> vector<8x8xf32>
    %66 = arith.truncf %65 : vector<8x8xf32> to vector<8x8xbf16>
    %67 = vector.extract_strided_slice %2 {offsets = [16, 0], sizes = [8, 32], strides = [1, 1]} : vector<32x32xbf16> to vector<8x32xbf16>
    %cst_21 = arith.constant dense<0.000000e+00> : vector<8x32xf32>
    %68 = tpu.matmul %66, %67, %cst_21 {dimension_numbers = #tpu.dot_dimension_numbers<[1], [0], [0], [1], [0, 0, 1, 1], [], []>} : vector<8x8xbf16>, vector<8x32xbf16>, vector<8x32xf32> -> vector<8x32xf32>
    %69 = arith.addf %47, %68 : vector<8x32xf32>
    %70 = vector.extract_strided_slice %1 {offsets = [0, 24], sizes = [8, 8], strides = [1, 1]} : vector<8x96xbf16> to vector<8x8xbf16>
    %71 = vector.extract_strided_slice %1 {offsets = [0, 56], sizes = [8, 8], strides = [1, 1]} : vector<8x96xbf16> to vector<8x8xbf16>
    %72 = vector.extract_strided_slice %1 {offsets = [0, 88], sizes = [8, 8], strides = [1, 1]} : vector<8x96xbf16> to vector<8x8xbf16>
    %cst_22 = arith.constant dense<0.000000e+00> : vector<8x8xf32>
    %73 = tpu.matmul %70, %71, %cst_22 {dimension_numbers = #tpu.dot_dimension_numbers<[1], [1], [0], [0], [0, 0, 1, 0], [], []>} : vector<8x8xbf16>, vector<8x8xbf16>, vector<8x8xf32> -> vector<8x8xf32>
    %cst_23 = arith.constant 0.353553385 : f32
    %74 = vector.broadcast %cst_23 : f32 to vector<8x8xf32>
    %75 = arith.mulf %73, %74 : vector<8x8xf32>
    %cst_24 = arith.constant dense<0xFF800000> : vector<8xf32>
    %76 = vector.multi_reduction <maximumf>, %75, %cst_24 [1] : vector<8x8xf32> to vector<8xf32>
    %77 = vector.shape_cast %76 : vector<8xf32> to vector<8x1xf32>
    %78 = vector.broadcast %77 : vector<8x1xf32> to vector<8x8xf32>
    %79 = arith.subf %75, %78 : vector<8x8xf32>
    %80 = math.exp %79 : vector<8x8xf32>
    %cst_25 = arith.constant dense<0.000000e+00> : vector<8xf32>
    %81 = vector.multi_reduction <add>, %80, %cst_25 [1] : vector<8x8xf32> to vector<8xf32>
    %82 = vector.shape_cast %81 : vector<8xf32> to vector<8x1xf32>
    %83 = tpu.reciprocal %82 {approx = true} : vector<8x1xf32> -> vector<8x1xf32>
    %84 = vector.broadcast %83 : vector<8x1xf32> to vector<8x8xf32>
    %85 = arith.mulf %80, %84 : vector<8x8xf32>
    %86 = arith.truncf %85 : vector<8x8xf32> to vector<8x8xbf16>
    %cst_26 = arith.constant dense<0.000000e+00> : vector<8x8xf32>
    %87 = tpu.matmul %86, %72, %cst_26 {dimension_numbers = #tpu.dot_dimension_numbers<[1], [0], [0], [1], [0, 0, 1, 1], [], []>} : vector<8x8xbf16>, vector<8x8xbf16>, vector<8x8xf32> -> vector<8x8xf32>
    %88 = arith.truncf %87 : vector<8x8xf32> to vector<8x8xbf16>
    %89 = vector.extract_strided_slice %2 {offsets = [24, 0], sizes = [8, 32], strides = [1, 1]} : vector<32x32xbf16> to vector<8x32xbf16>
    %cst_27 = arith.constant dense<0.000000e+00> : vector<8x32xf32>
    %90 = tpu.matmul %88, %89, %cst_27 {dimension_numbers = #tpu.dot_dimension_numbers<[1], [0], [0], [1], [0, 0, 1, 1], [], []>} : vector<8x8xbf16>, vector<8x32xbf16>, vector<8x32xf32> -> vector<8x32xf32>
    %91 = arith.addf %69, %90 : vector<8x32xf32>
    %c0_28 = arith.constant 0 : index
    %c0_29 = arith.constant 0 : index
    %92 = vector.load %arg3[%c0_28, %c0_29] : memref<1x32xf32, #tpu.memory_space<vmem>>, vector<1x32xf32>
    %93 = vector.broadcast %92 : vector<1x32xf32> to vector<8x32xf32>
    %94 = arith.addf %91, %93 : vector<8x32xf32>
    %c0_30 = arith.constant 0 : index
    %c0_31 = arith.constant 0 : index
    %c0_32 = arith.constant 0 : index
    %95 = vector.load %arg4[%c0_30, %c0_31, %c0_32] : memref<1x8x32xf32, #tpu.memory_space<vmem>>, vector<1x8x32xf32>
    %96 = vector.shape_cast %95 : vector<1x8x32xf32> to vector<8x32xf32>
    %97 = vector.shape_cast %94 : vector<8x32xf32> to vector<1x8x32xf32>
    tpu.vector_store %arg4[%c0_30, %c0_31, %c0_32], %97 {strides = array<i32>} : memref<1x8x32xf32, #tpu.memory_space<vmem>>, vector<1x8x32xf32>,
    return
  }
  func.func @transform_0(%arg0: i32) -> (i32, i32, i32) {
    %c0_i32 = arith.constant 0 : i32
    %c0_i32_0 = arith.constant 0 : i32
    %c0_i32_1 = arith.constant 0 : i32
    return %arg0, %c0_i32, %c0_i32_0 : i32, i32, i32
  }
  func.func @transform_1(%arg0: i32) -> (i32, i32) {
    %c0_i32 = arith.constant 0 : i32
    %c0_i32_0 = arith.constant 0 : i32
    %c0_i32_1 = arith.constant 0 : i32
    return %c0_i32, %c0_i32_0 : i32, i32
  }
  func.func @transform_2(%arg0: i32) -> (i32, i32) {
    %c0_i32 = arith.constant 0 : i32
    %c0_i32_0 = arith.constant 0 : i32
    %c0_i32_1 = arith.constant 0 : i32
    return %c0_i32, %c0_i32_0 : i32, i32
  }
  func.func @transform_3(%arg0: i32) -> (i32, i32, i32) {
    %c0_i32 = arith.constant 0 : i32
    %c0_i32_0 = arith.constant 0 : i32
    %c0_i32_1 = arith.constant 0 : i32
    return %arg0, %c0_i32, %c0_i32_0 : i32, i32, i32
  }
}

</mosaic_0001>

<llo_original>
// kernel: graph_attention_forward.2
$region0: #{graph_attention_forward.2}
  #allocation0 [shape = 'u32[]', space=smem, size = 0x4, offset = 0x4, fixed_abs, tag = 'smem constant byte address 0x4 - core index']
  #allocation1 [shape = 'u32[144,128]{1,0:T(1,128)}', space=vmem, size = 0x12000, scoped, tag = 'internal scratch']
  #allocation2 [shape = 'f32[16,96]{1,0:T(8,128)}', space=vmem, size = 0x2000, scoped, tag = 'scratch operand']
  %s0 = inlined_call_operand.vmem [shape: f32[16,32], index: 0, kind: input, shape index: {}]
  %s1 = inlined_call_operand.vmem [shape: bf16[32,96], index: 1, kind: input, shape index: {}]
  %s2 = inlined_call_operand.vmem [shape: f32[1,96], index: 2, kind: input, shape index: {}]
  %s3 = inlined_call_operand.vmem [shape: bf16[16,96], index: 3, kind: output, shape index: {}]
  %s4 = sld [smem:[#allocation0]]
  $region30: #{graph_attention_forward.2} parent=0
    _
  %s6 = ssub.s32 1, %s4
  %s7 = scalar_select 0, %s6, %s4
  // Predicated region
  $region2: #{graph_attention_forward.2} parent=0 // pred_check
    _
  $region3: #{graph_attention_forward.2} parent=0 // pred_check_branch
    %9 = sbr.rel (0) target = $region5
  $region4: #{graph_attention_forward.2} parent=0 // pred_region
    _
  $region5: #{graph_attention_forward.2} parent=0 // pred_fallthru
    _
  // Predicated region
  $region6: #{graph_attention_forward.2} parent=0 // pred_check
    _
  $region7: #{graph_attention_forward.2} parent=0 // pred_check_branch
    %11 = sbr.rel (0) target = $region9
  $region8: #{graph_attention_forward.2} parent=0 // pred_region
    _
  $region9: #{graph_attention_forward.2} parent=0 // pred_fallthru
    _
  // Predicated region
  $region10: #{graph_attention_forward.2} parent=0 // pred_check
    _
  $region11: #{graph_attention_forward.2} parent=0 // pred_check_branch
    %13 = sbr.rel (0) target = $region13
  $region12: #{graph_attention_forward.2} parent=0 // pred_region
    _
  $region13: #{graph_attention_forward.2} parent=0 // pred_fallthru
    _
  %p15 = scmp.eq.s32.totalorder 0, 0
  // Predicated region
  $region14: #{graph_attention_forward.2} parent=0 // pred_check
    %p16 = pneg %p15
  $region15: #{graph_attention_forward.2} parent=0 // pred_check_branch
    %18 = sbr.rel (%p16) target = $region17
  $region16: #{graph_attention_forward.2} parent=0 // pred_region
    %vm19 = vcmask 785408
    %20 = vst.msk [vmem:[#allocation2] sm:$0xff] %vm19, 0.0
    %21 = vst.msk [vmem:[#allocation2 + $0x8] sm:$0xff] %vm19, 0.0
  $region17: #{graph_attention_forward.2} parent=0 // pred_fallthru
    _
  %v22 = vld [vmem:[#allocation2] sm:$0xff]
  %v23 = vld [vmem:[#allocation2 + $0x8] sm:$0xff]
  %v24 = vld [vmem:[%s0] sm:$0xff]
  %v25 = vld [vmem:[%s0 + $0x8] sm:$0xff]
  %v26 = vpack.c.bf16 %v25, %v24
  %v27 = vld [vmem:[%s1] sm:$0xf]
  %v28 = vld [vmem:[%s1 + $0x4] sm:$0xf]
  %v29 = vld [vmem:[%s1 + $0x8] sm:$0xf]
  %v30 = vld [vmem:[%s1 + $0xc] sm:$0xf]
  %v35 = vunpack.c.l.b16 %v27
  %v36 = vunpack.c.l.b16 %v28
  %v37 = vunpack.c.l.b16 %v29
  %v38 = vunpack.c.l.b16 %v30
  %v39 = vpack.c.b16 %v36, %v35
  %v40 = vpack.c.b16 %v38, %v37
  %vm43 = vcmask 261120
  %v45 = vsel %vm43, %v26, 0
  %47 = vmatprep.subr.bf16.mxu0 0
  %48 = vmatpush1.bf16.msra.mxu0 %v39
  %49 = vmatprep.subr.bf16.mxu0 0
  %50 = vmatpush1.bf16.msra.mxu0 %v40
  %51 = vmatprep.subr.bf16.mxu0 0
  %52 = vmatpush1.bf16.msra.mxu0 0
  %53 = vmatprep.subr.bf16.mxu0 0
  %54 = vmatpush1.bf16.msra.mxu0 0
  %55 = vmatprep.subr.bf16.mxu0 0
  %56 = vmatpush1.bf16.msra.mxu0 0
  %57 = vmatprep.subr.bf16.mxu0 0
  %58 = vmatpush1.bf16.msra.mxu0 0
  %59 = vmatprep.subr.bf16.mxu0 0
  %60 = vmatpush1.bf16.msra.mxu0 0
  %61 = vmatprep.subr.bf16.mxu0 0
  %62 = vmatpush1.bf16.msra.mxu0 0
  %63 = vmatprep.subr.bf16.mxu0 0
  %64 = vmatpush1.bf16.msra.mxu0 0
  %65 = vmatprep.subr.bf16.mxu0 0
  %66 = vmatpush1.bf16.msra.mxu0 0
  %67 = vmatprep.subr.bf16.mxu0 0
  %68 = vmatpush1.bf16.msra.mxu0 0
  %69 = vmatprep.subr.bf16.mxu0 0
  %70 = vmatpush1.bf16.msra.mxu0 0
  %71 = vmatprep.subr.bf16.mxu0 0
  %72 = vmatpush1.bf16.msra.mxu0 0
  %73 = vmatprep.subr.bf16.mxu0 0
  %74 = vmatpush1.bf16.msra.mxu0 0
  %75 = vmatprep.subr.bf16.mxu0 0
  %76 = vmatpush1.bf16.msra.mxu0 0
  %77 = vmatprep.subr.bf16.mxu0 0
  %78 = vmatpush1.bf16.msra.mxu0 0
  %79 = vmatprep.mubr.bf16.mxu0 0
  %80 = vmatmul.mubr.bf16.gmra.mrb[0].mxu0 %v45
  %v81 = vpop.f32.mrb[0].mxu0
  %v82 = vadd.f32 0.0, %v81
  %v83 = vpop.f32.mrb[0].mxu0
  %v84 = vpop.f32.mrb[0].mxu0
  %v85 = vadd.f32 0.0, %v84
  %v86 = vpop.f32.mrb[0].mxu0
  %87 = vdwg.mxu0
  %v88 = vadd.f32 %v22, %v82
  %v89 = vadd.f32 %v23, %v85
  %vm90 = vcmask 785408
  %91 = vst.msk [vmem:[#allocation2] sm:$0xff] %vm90, %v88
  %92 = vst.msk [vmem:[#allocation2 + $0x8] sm:$0xff] %vm90, %v89
  // Predicated region
  $region18: #{graph_attention_forward.2} parent=0 // pred_check
    %p93 = pneg %p15
  $region19: #{graph_attention_forward.2} parent=0 // pred_check_branch
    %95 = sbr.rel (%p93) target = $region21
  $region20: #{graph_attention_forward.2} parent=0 // pred_region
    %v96 = vld [vmem:[#allocation2] sm:$0xff]
    %v97 = vld [vmem:[#allocation2 + $0x8] sm:$0xff]
    %v98 = vld [vmem:[%s2] sm:$0x1]
    %v100 = vlaneseq
    %v101 = vshrl.u32 %v100, 7
    %v102 = vsub.s32 0, %v101
    %v103 = vrot.slane %v98, %v102
    %v105 = vadd.f32 %v96, %v103
    %v106 = vadd.f32 %v97, %v103
    %v107 = vpack.c.bf16 %v106, %v105
    %v109 = vunpack.c.l.b16 %v107
    %v110 = vunpack.c.h.b16 %v107
    %v111 = vpack.c.b16 %v109, %v109
    %v112 = vpack.c.b16 %v110, %v110
    %vm115 = vcmask 781312
    %116 = vst.msk [vmem:[%s3] sm:$0xf] %vm115, %v111
    %117 = vst.msk [vmem:[%s3 + $0x4] sm:$0xf] %vm115, %v112
  $region21: #{graph_attention_forward.2} parent=0 // pred_fallthru
    _
  // Predicated region
  $region22: #{graph_attention_forward.2} parent=0 // pred_check
    _
  $region23: #{graph_attention_forward.2} parent=0 // pred_check_branch
    %119 = sbr.rel (0) target = $region25
  $region24: #{graph_attention_forward.2} parent=0 // pred_region
    _
  $region25: #{graph_attention_forward.2} parent=0 // pred_fallthru
    _
  // Predicated region
  $region26: #{graph_attention_forward.2} parent=0 // pred_check
    _
  $region27: #{graph_attention_forward.2} parent=0 // pred_check_branch
    %121 = sbr.rel (0) target = $region29
  $region28: #{graph_attention_forward.2} parent=0 // pred_region
    _
  $region29: #{graph_attention_forward.2} parent=0 // pred_fallthru
    _

// kernel: graph_attention_forward.3
$region0: #{graph_attention_forward.3}
  #allocation0 [shape = 'u32[]', space=smem, size = 0x4, offset = 0x4, fixed_abs, tag = 'smem constant byte address 0x4 - core index']
  #allocation1 [shape = 'u32[144,128]{1,0:T(1,128)}', space=vmem, size = 0x12000, scoped, tag = 'internal scratch']
  %s0 = inlined_call_operand.vmem [shape: bf16[2,8,96], index: 0, kind: input, shape index: {}]
  %s1 = inlined_call_operand.vmem [shape: bf16[32,32], index: 1, kind: input, shape index: {}]
  %s2 = inlined_call_operand.vmem [shape: f32[1,32], index: 2, kind: input, shape index: {}]
  %s3 = inlined_call_operand.hbm [shape: f32[2,8,32], index: 3, kind: output, shape index: {}]
  %s4 = sld [smem:[#allocation0]]
  $region45: #{graph_attention_forward.3} parent=0
    _
  %s6 = ssub.s32 1, %s4
  %s7 = scalar_select 0, %s6, %s4
  $region1: #{graph_attention_forward.3} parent=0
    #allocation2 [shape = 'u8[8192]{0}', space=vmem, size = 0x2000, scoped, tag = 'output window, operand 0']
    #allocation3 [shape = 's32[2]{0}', space=sflag, size = 0x8, scoped, tag = 'scoped memory for graph_attention_forward.3']
    %8 = vsyncpa [#allocation3], 0
    %s9 = scalar_lea.sflag [#allocation3], 1
    %10 = vsyncpa %s9, 0
    loop: start=0, step=1, limit=4
    $region2: #{graph_attention_forward.3} parent=1 // loop_pre_header
      _
    $region3: #{graph_attention_forward.3} parent=1 // loop_header
      %s12 = sphi 0, %s16
      %p13 = scmp.ge.s32.totalorder %s12, 4
      %s22 = sphi 0, %s24
      %s25 = sphi 0, %s22
      %s26 = sphi 0, %s25
      %s42 = sphi 0, %s26
      %s46 = sphi 0, %s46
      %s48 = sphi 0, %s46
      %s49 = sphi 0, %s48
      %s63 = sphi 0, %s49
      %s67 = sphi 0, %s67
      %s69 = sphi 0, %s67
      %s70 = sphi 0, %s69
      %s84 = sphi 0, %s70
      %s90 = sphi 0, %s92
      %s93 = sphi 0, %s90
      %s94 = sphi 0, %s93
      %s110 = sphi 0, %s94
    $region4: #{graph_attention_forward.3} parent=1 // loop_header_branch
      %15 = sbr.rel (%p13) target = $region8
    $region5: #{graph_attention_forward.3} parent=1 // loop_body
      %s17 = ssub.s32 %s12, 1
      %s18 = ssub.s32 %s12, 2
      %s19 = sadd.s32 %s12, 1
      %s20 = ssub.s32 %s12, %s19
      %p21 = scmp.eq.s32.totalorder %s20, 0
      %s23 = sadd.s32 %s22, 1
      %s24 = scalar_select %p21, %s22, %s23
      %p27 = pneg %p21
      %p28 = scmp.eq.s32.totalorder %s12, 1
      %p29 = por %p27, %p28
      %p30 = scmp.ne.s32.totalorder %s22, %s25
      %p31 = scmp.eq.s32.totalorder %s12, 0
      %p32 = por %p30, %p31
      %p33 = scmp.ne.s32.totalorder %s22, %s25
      %p34 = scmp.eq.s32.totalorder %s17, 1
      %p35 = por %p33, %p34
      %p36 = scmp.ne.s32.totalorder %s25, %s26
      %p37 = scmp.eq.s32.totalorder %s17, 0
      %p38 = por %p36, %p37
      %p39 = scmp.ne.s32.totalorder %s25, %s26
      %p40 = scmp.eq.s32.totalorder %s18, 1
      %p41 = por %p39, %p40
      %p43 = scmp.ne.s32.totalorder %s26, %s42
      %p44 = scmp.eq.s32.totalorder %s18, 0
      %p45 = por %p43, %p44
      %s47 = sadd.s32 %s46, 1
      %p50 = scmp.eq.s32.totalorder %s12, 1
      %p51 = scmp.ne.s32.totalorder %s46, %s48
      %p52 = scmp.eq.s32.totalorder %s12, 0
      %p53 = por %p51, %p52
      %p54 = scmp.ne.s32.totalorder %s46, %s48
      %p55 = scmp.eq.s32.totalorder %s17, 1
      %p56 = por %p54, %p55
      %p57 = scmp.ne.s32.totalorder %s48, %s49
      %p58 = scmp.eq.s32.totalorder %s17, 0
      %p59 = por %p57, %p58
      %p60 = scmp.ne.s32.totalorder %s48, %s49
      %p61 = scmp.eq.s32.totalorder %s18, 1
      %p62 = por %p60, %p61
      %p64 = scmp.ne.s32.totalorder %s49, %s63
      %p65 = scmp.eq.s32.totalorder %s18, 0
      %p66 = por %p64, %p65
      %s68 = sadd.s32 %s67, 1
      %p71 = scmp.eq.s32.totalorder %s12, 1
      %p72 = scmp.ne.s32.totalorder %s67, %s69
      %p73 = scmp.eq.s32.totalorder %s12, 0
      %p74 = por %p72, %p73
      %p75 = scmp.ne.s32.totalorder %s67, %s69
      %p76 = scmp.eq.s32.totalorder %s17, 1
      %p77 = por %p75, %p76
      %p78 = scmp.ne.s32.totalorder %s69, %s70
      %p79 = scmp.eq.s32.totalorder %s17, 0
      %p80 = por %p78, %p79
      %p81 = scmp.ne.s32.totalorder %s69, %s70
      %p82 = scmp.eq.s32.totalorder %s18, 1
      %p83 = por %p81, %p82
      %p85 = scmp.ne.s32.totalorder %s70, %s84
      %p86 = scmp.eq.s32.totalorder %s18, 0
      %p87 = por %p85, %p86
      %s88 = ssub.s32 %s12, %s19
      %p89 = scmp.eq.s32.totalorder %s88, 0
      %s91 = sadd.s32 %s90, 1
      %s92 = scalar_select %p89, %s90, %s91
      %p95 = pneg %p89
      %p96 = scmp.eq.s32.totalorder %s12, 1
      %p97 = por %p95, %p96
      %p98 = scmp.ne.s32.totalorder %s90, %s93
      %p99 = scmp.eq.s32.totalorder %s12, 0
      %p100 = por %p98, %p99
      %p101 = scmp.ne.s32.totalorder %s90, %s93
      %p102 = scmp.eq.s32.totalorder %s17, 1
      %p103 = por %p101, %p102
      %p104 = scmp.ne.s32.totalorder %s93, %s94
      %p105 = scmp.eq.s32.totalorder %s17, 0
      %p106 = por %p104, %p105
      %p107 = scmp.ne.s32.totalorder %s93, %s94
      %p108 = scmp.eq.s32.totalorder %s18, 1
      %p109 = por %p107, %p108
      %p111 = scmp.ne.s32.totalorder %s94, %s110
      %p112 = scmp.eq.s32.totalorder %s18, 0
      %p113 = por %p111, %p112
      %p114 = scmp.le.s32.totalorder 1, %s12
      %p115 = scmp.lt.s32.totalorder %s12, 3
      %p116 = pnand %p114, %p115
      %p117 = pneg %p116
      // Predicated region
      $region9: #{graph_attention_forward.3} parent=5 // pred_check
        _
      $region10: #{graph_attention_forward.3} parent=5 // pred_check_branch
        %119 = sbr.rel (%p116) target = $region12
      $region11: #{graph_attention_forward.3} parent=5 // pred_region
        %s120 = ssub.s32 %s12, 1
        // Predicated region
        $region13: #{graph_attention_forward.3} parent=11 // pred_check
          %p121 = pneg %p59
        $region14: #{graph_attention_forward.3} parent=11 // pred_check_branch
          %123 = sbr.rel (%p121) target = $region16
        $region15: #{graph_attention_forward.3} parent=11 // pred_region
          _
        $region16: #{graph_attention_forward.3} parent=11 // pred_fallthru
          _
        // Predicated region
        $region17: #{graph_attention_forward.3} parent=11 // pred_check
          %p124 = pneg %p80
        $region18: #{graph_attention_forward.3} parent=11 // pred_check_branch
          %126 = sbr.rel (%p124) target = $region20
        $region19: #{graph_attention_forward.3} parent=11 // pred_region
          _
        $region20: #{graph_attention_forward.3} parent=11 // pred_fallthru
          _
      $region12: #{graph_attention_forward.3} parent=5 // pred_fallthru
        _
      %p127 = scmp.lt.s32.totalorder %s12, 2
      // Predicated region
      $region21: #{graph_attention_forward.3} parent=5 // pred_check
        %p128 = pneg %p127
      $region22: #{graph_attention_forward.3} parent=5 // pred_check_branch
        %130 = sbr.rel (%p128) target = $region24
      $region23: #{graph_attention_forward.3} parent=5 // pred_region
        // Predicated region
        $region25: #{graph_attention_forward.3} parent=23 // pred_check
          %p131 = pneg %p32
        $region26: #{graph_attention_forward.3} parent=23 // pred_check_branch
          %133 = sbr.rel (%p131) target = $region28
        $region27: #{graph_attention_forward.3} parent=23 // pred_region
          %p134 = scmp.lt.s32.totalorder %s12, 1
          %s135 = scalar_select %p134, %s12, 1
          %s136 = smul.addr %s135, 4
          %s137 = scalar_lea.vmem %s0, %s136
        $region28: #{graph_attention_forward.3} parent=23 // pred_fallthru
          _
      $region24: #{graph_attention_forward.3} parent=5 // pred_fallthru
        _
      %p138 = scmp.le.s32.totalorder 1, %s12
      %p139 = scmp.lt.s32.totalorder %s12, 3
      %p140 = pnand %p138, %p139
      %p141 = pneg %p140
      // Predicated region
      $region29: #{graph_attention_forward.3} parent=5 // pred_check
        _
      $region30: #{graph_attention_forward.3} parent=5 // pred_check_branch
        %143 = sbr.rel (%p140) target = $region32
      $region31: #{graph_attention_forward.3} parent=5 // pred_region
        %s144 = ssub.s32 %s12, 1
        %p145 = scmp.lt.s32.totalorder %s17, 1
        %s146 = scalar_select %p145, %s17, 1
        %s147 = smul.addr %s146, 4
        %s148 = scalar_lea.vmem %s0, %s147
        %p149 = pneg %p38
        %p150 = pneg %p35
        %p151 = pneg %p59
        %p152 = pneg %p56
        %p153 = pneg %p80
        %p154 = pneg %p77
        %p155 = pneg %p106
        %p156 = pneg %p103
        %s157 = sand.u32 %s93, 1
        %s158 = scalar_lea.sflag [#allocation3], %s157
        %s159 = sand.u32 %s93, 1
        %s160 = smul.addr %s159, 8
        %s161 = scalar_lea.vmem [#allocation2], %s160
        %p162 = scmp.lt.s32.totalorder %s17, 1
        %s163 = scalar_select %p162, %s17, 1
        %s164 = smul.addr %s163, 4
        %s165 = scalar_lea.vmem %s0, %s164
        %v167 = vld [vmem:[%s165] sm:$0xf]
        %v168 = vld [vmem:[%s1] sm:$0xf]
        %v169 = vld [vmem:[%s1 + $0x4] sm:$0xf]
        %v170 = vld [vmem:[%s1 + $0x8] sm:$0xf]
        %v171 = vld [vmem:[%s1 + $0xc] sm:$0xf]
        %v173 = vunpack.c.l.b16 %v167
        %v174 = vpack.c.b16 %v173, %v173
        %175 = vrot.lane.b32.xlu0 %v174, 96
        %v176 = vpop.permute.xlu0 %175
        %vm177 = vcmask 64512
        %v179 = vsel %vm177, %v167, 0
        %v182 = vsel %vm177, %v176, 0
        %184 = vmatprep.subr.bf16.mxu0 0
        %185 = vmatpush1.bf16.xpose.msra.mxu0 %v182
        %186 = vmatprep.subr.bf16.mxu0 0
        %187 = vmatpush1.bf16.xpose.msra.mxu0 0
        %188 = vmatprep.subr.bf16.mxu0 0
        %189 = vmatpush1.bf16.xpose.msra.mxu0 0
        %190 = vmatprep.subr.bf16.mxu0 0
        %191 = vmatpush1.bf16.xpose.msra.mxu0 0
        %192 = vmatprep.subr.bf16.mxu0 0
        %193 = vmatpush1.bf16.xpose.msra.mxu0 0
        %194 = vmatprep.subr.bf16.mxu0 0
        %195 = vmatpush1.bf16.xpose.msra.mxu0 0
        %196 = vmatprep.subr.bf16.mxu0 0
        %197 = vmatpush1.bf16.xpose.msra.mxu0 0
        %198 = vmatprep.subr.bf16.mxu0 0
        %199 = vmatpush1.bf16.xpose.msra.mxu0 0
        %200 = vmatprep.subr.bf16.mxu0 0
        %201 = vmatpush1.bf16.xpose.msra.mxu0 0
        %202 = vmatprep.subr.bf16.mxu0 0
        %203 = vmatpush1.bf16.xpose.msra.mxu0 0
        %204 = vmatprep.subr.bf16.mxu0 0
        %205 = vmatpush1.bf16.xpose.msra.mxu0 0
        %206 = vmatprep.subr.bf16.mxu0 0
        %207 = vmatpush1.bf16.xpose.msra.mxu0 0
        %208 = vmatprep.subr.bf16.mxu0 0
        %209 = vmatpush1.bf16.xpose.msra.mxu0 0
        %210 = vmatprep.subr.bf16.mxu0 0
        %211 = vmatpush1.bf16.xpose.msra.mxu0 0
        %212 = vmatprep.subr.bf16.mxu0 0
        %213 = vmatpush1.bf16.xpose.msra.mxu0 0
        %214 = vmatprep.subr.bf16.mxu0 0
        %215 = vmatpush1.bf16.xpose.msra.mxu0 0
        %216 = vmatprep.mubr.bf16.mxu0 0
        %217 = vmatmul.mubr.bf16.gmra.mrb[0].mxu0 %v179
        %v218 = vpop.f32.mrb[0].mxu0
        %v219 = vadd.f32 0.0, %v218
        %v220 = vpop.f32.mrb[0].mxu0
        %v221 = vpop.f32.mrb[0].mxu0
        %v222 = vpop.f32.mrb[0].mxu0
        %223 = vdwg.mxu0
        %v224 = vmul.f32 %v219, 0.35355338
        %v225 = vsel %vm177, %v224, -inf
        %226 = vmax.xlane.f32.xlu0 %v225
        %v227 = vpop.xlane.xlu0 %226
        %v228 = vsub.f32 %v224, %v227
        %v229 = vmul.f32 %v228, 1.442695
        %v230 = vpow.pop %v229
        %v231 = vsel %vm177, %v230, 0.0
        %232 = vadd.xlane.f32.xlu0 %v231
        %v233 = vpop.xlane.xlu0 %232
        %v234 = vrcp.pop %v233
        %v235 = vmul.f32 %v230, %v234
        %v236 = vpack.c.bf16 %v235, %v235
        %237 = vrot.lane.b32.xlu0 %v174, 64
        %v238 = vpop.permute.xlu0 %237
        %v240 = vsel %vm177, %v236, 0
        %vm242 = vcmask 1043456
        %v244 = vsel %vm242, %v238, 0
        %246 = vmatprep.subr.bf16.mxu0 0
        %247 = vmatpush1.bf16.msra.mxu0 %v244
        %248 = vmatprep.subr.bf16.mxu0 0
        %249 = vmatpush1.bf16.msra.mxu0 0
        %250 = vmatprep.subr.bf16.mxu0 0
        %251 = vmatpush1.bf16.msra.mxu0 0
        %252 = vmatprep.subr.bf16.mxu0 0
        %253 = vmatpush1.bf16.msra.mxu0 0
        %254 = vmatprep.subr.bf16.mxu0 0
        %255 = vmatpush1.bf16.msra.mxu0 0
        %256 = vmatprep.subr.bf16.mxu0 0
        %257 = vmatpush1.bf16.msra.mxu0 0
        %258 = vmatprep.subr.bf16.mxu0 0
        %259 = vmatpush1.bf16.msra.mxu0 0
        %260 = vmatprep.subr.bf16.mxu0 0
        %261 = vmatpush1.bf16.msra.mxu0 0
        %262 = vmatprep.subr.bf16.mxu0 0
        %263 = vmatpush1.bf16.msra.mxu0 0
        %264 = vmatprep.subr.bf16.mxu0 0
        %265 = vmatpush1.bf16.msra.mxu0 0
        %266 = vmatprep.subr.bf16.mxu0 0
        %267 = vmatpush1.bf16.msra.mxu0 0
        %268 = vmatprep.subr.bf16.mxu0 0
        %269 = vmatpush1.bf16.msra.mxu0 0
        %270 = vmatprep.subr.bf16.mxu0 0
        %271 = vmatpush1.bf16.msra.mxu0 0
        %272 = vmatprep.subr.bf16.mxu0 0
        %273 = vmatpush1.bf16.msra.mxu0 0
        %274 = vmatprep.subr.bf16.mxu0 0
        %275 = vmatpush1.bf16.msra.mxu0 0
        %276 = vmatprep.subr.bf16.mxu0 0
        %277 = vmatpush1.bf16.msra.mxu0 0
        %278 = vmatprep.mubr.bf16.mxu0 0
        %279 = vmatmul.mubr.bf16.gmra.mrb[0].mxu0 %v240
        %v280 = vpop.f32.mrb[0].mxu0
        %v281 = vadd.f32 0.0, %v280
        %v282 = vpop.f32.mrb[0].mxu0
        %v283 = vpop.f32.mrb[0].mxu0
        %v284 = vpop.f32.mrb[0].mxu0
        %285 = vdwg.mxu0
        %v286 = vpack.c.bf16 %v281, %v281
        %287 = vrot.lane.b32.xlu0 %v174, 120
        %v288 = vpop.permute.xlu0 %287
        %289 = vrot.lane.b32.xlu0 %v174, 88
        %v290 = vpop.permute.xlu0 %289
        %v292 = vsel %vm177, %v288, 0
        %v295 = vsel %vm177, %v290, 0
        %297 = vmatprep.subr.bf16.mxu0 0
        %298 = vmatpush1.bf16.xpose.msra.mxu0 %v295
        %299 = vmatprep.subr.bf16.mxu0 0
        %300 = vmatpush1.bf16.xpose.msra.mxu0 0
        %301 = vmatprep.subr.bf16.mxu0 0
        %302 = vmatpush1.bf16.xpose.msra.mxu0 0
        %303 = vmatprep.subr.bf16.mxu0 0
        %304 = vmatpush1.bf16.xpose.msra.mxu0 0
        %305 = vmatprep.subr.bf16.mxu0 0
        %306 = vmatpush1.bf16.xpose.msra.mxu0 0
        %307 = vmatprep.subr.bf16.mxu0 0
        %308 = vmatpush1.bf16.xpose.msra.mxu0 0
        %309 = vmatprep.subr.bf16.mxu0 0
        %310 = vmatpush1.bf16.xpose.msra.mxu0 0
        %311 = vmatprep.subr.bf16.mxu0 0
        %312 = vmatpush1.bf16.xpose.msra.mxu0 0
        %313 = vmatprep.subr.bf16.mxu0 0
        %314 = vmatpush1.bf16.xpose.msra.mxu0 0
        %315 = vmatprep.subr.bf16.mxu0 0
        %316 = vmatpush1.bf16.xpose.msra.mxu0 0
        %317 = vmatprep.subr.bf16.mxu0 0
        %318 = vmatpush1.bf16.xpose.msra.mxu0 0
        %319 = vmatprep.subr.bf16.mxu0 0
        %320 = vmatpush1.bf16.xpose.msra.mxu0 0
        %321 = vmatprep.subr.bf16.mxu0 0
        %322 = vmatpush1.bf16.xpose.msra.mxu0 0
        %323 = vmatprep.subr.bf16.mxu0 0
        %324 = vmatpush1.bf16.xpose.msra.mxu0 0
        %325 = vmatprep.subr.bf16.mxu0 0
        %326 = vmatpush1.bf16.xpose.msra.mxu0 0
        %327 = vmatprep.subr.bf16.mxu0 0
        %328 = vmatpush1.bf16.xpose.msra.mxu0 0
        %329 = vmatprep.mubr.bf16.mxu0 0
        %330 = vmatmul.mubr.bf16.gmra.mrb[0].mxu0 %v292
        %v331 = vpop.f32.mrb[0].mxu0
        %v332 = vadd.f32 0.0, %v331
        %v333 = vpop.f32.mrb[0].mxu0
        %v334 = vpop.f32.mrb[0].mxu0
        %v335 = vpop.f32.mrb[0].mxu0
        %336 = vdwg.mxu0
        %v337 = vmul.f32 %v332, 0.35355338
        %v338 = vsel %vm177, %v337, -inf
        %339 = vmax.xlane.f32.xlu0 %v338
        %v340 = vpop.xlane.xlu0 %339
        %v341 = vsub.f32 %v337, %v340
        %v342 = vmul.f32 %v341, 1.442695
        %v343 = vpow.pop %v342
        %v344 = vsel %vm177, %v343, 0.0
        %345 = vadd.xlane.f32.xlu0 %v344
        %v346 = vpop.xlane.xlu0 %345
        %v347 = vrcp.pop %v346
        %v348 = vmul.f32 %v343, %v347
        %v349 = vpack.c.bf16 %v348, %v348
        %350 = vrot.lane.b32.xlu0 %v174, 56
        %v351 = vpop.permute.xlu0 %350
        %v353 = vsel %vm177, %v349, 0
        %v356 = vsel %vm242, %v351, 0
        %358 = vmatprep.subr.bf16.mxu0 0
        %359 = vmatpush1.bf16.msra.mxu0 %v356
        %360 = vmatprep.subr.bf16.mxu0 0
        %361 = vmatpush1.bf16.msra.mxu0 0
        %362 = vmatprep.subr.bf16.mxu0 0
        %363 = vmatpush1.bf16.msra.mxu0 0
        %364 = vmatprep.subr.bf16.mxu0 0
        %365 = vmatpush1.bf16.msra.mxu0 0
        %366 = vmatprep.subr.bf16.mxu0 0
        %367 = vmatpush1.bf16.msra.mxu0 0
        %368 = vmatprep.subr.bf16.mxu0 0
        %369 = vmatpush1.bf16.msra.mxu0 0
        %370 = vmatprep.subr.bf16.mxu0 0
        %371 = vmatpush1.bf16.msra.mxu0 0
        %372 = vmatprep.subr.bf16.mxu0 0
        %373 = vmatpush1.bf16.msra.mxu0 0
        %374 = vmatprep.subr.bf16.mxu0 0
        %375 = vmatpush1.bf16.msra.mxu0 0
        %376 = vmatprep.subr.bf16.mxu0 0
        %377 = vmatpush1.bf16.msra.mxu0 0
        %378 = vmatprep.subr.bf16.mxu0 0
        %379 = vmatpush1.bf16.msra.mxu0 0
        %380 = vmatprep.subr.bf16.mxu0 0
        %381 = vmatpush1.bf16.msra.mxu0 0
        %382 = vmatprep.subr.bf16.mxu0 0
        %383 = vmatpush1.bf16.msra.mxu0 0
        %384 = vmatprep.subr.bf16.mxu0 0
        %385 = vmatpush1.bf16.msra.mxu0 0
        %386 = vmatprep.subr.bf16.mxu0 0
        %387 = vmatpush1.bf16.msra.mxu0 0
        %388 = vmatprep.subr.bf16.mxu0 0
        %389 = vmatpush1.bf16.msra.mxu0 0
        %390 = vmatprep.mubr.bf16.mxu0 0
        %391 = vmatmul.mubr.bf16.gmra.mrb[0].mxu0 %v353
        %v392 = vpop.f32.mrb[0].mxu0
        %v393 = vadd.f32 0.0, %v392
        %v394 = vpop.f32.mrb[0].mxu0
        %v395 = vpop.f32.mrb[0].mxu0
        %v396 = vpop.f32.mrb[0].mxu0
        %397 = vdwg.mxu0
        %v398 = vpack.c.bf16 %v393, %v393
        %v400 = vsel %vm177, %v398, 0
        %v403 = vsel %vm242, %v169, 0
        %405 = vmatprep.subr.bf16.mxu0 0
        %406 = vmatpush1.bf16.msra.mxu0 %v403
        %407 = vmatprep.subr.bf16.mxu0 0
        %408 = vmatpush1.bf16.msra.mxu0 0
        %409 = vmatprep.subr.bf16.mxu0 0
        %410 = vmatpush1.bf16.msra.mxu0 0
        %411 = vmatprep.subr.bf16.mxu0 0
        %412 = vmatpush1.bf16.msra.mxu0 0
        %413 = vmatprep.subr.bf16.mxu0 0
        %414 = vmatpush1.bf16.msra.mxu0 0
        %415 = vmatprep.subr.bf16.mxu0 0
        %416 = vmatpush1.bf16.msra.mxu0 0
        %417 = vmatprep.subr.bf16.mxu0 0
        %418 = vmatpush1.bf16.msra.mxu0 0
        %419 = vmatprep.subr.bf16.mxu0 0
        %420 = vmatpush1.bf16.msra.mxu0 0
        %421 = vmatprep.subr.bf16.mxu0 0
        %422 = vmatpush1.bf16.msra.mxu0 0
        %423 = vmatprep.subr.bf16.mxu0 0
        %424 = vmatpush1.bf16.msra.mxu0 0
        %425 = vmatprep.subr.bf16.mxu0 0
        %426 = vmatpush1.bf16.msra.mxu0 0
        %427 = vmatprep.subr.bf16.mxu0 0
        %428 = vmatpush1.bf16.msra.mxu0 0
        %429 = vmatprep.subr.bf16.mxu0 0
        %430 = vmatpush1.bf16.msra.mxu0 0
        %431 = vmatprep.subr.bf16.mxu0 0
        %432 = vmatpush1.bf16.msra.mxu0 0
        %433 = vmatprep.subr.bf16.mxu0 0
        %434 = vmatpush1.bf16.msra.mxu0 0
        %435 = vmatprep.subr.bf16.mxu0 0
        %436 = vmatpush1.bf16.msra.mxu0 0
        %437 = vmatprep.mubr.bf16.mxu0 0
        %438 = vmatmul.mubr.bf16.gmra.mrb[0].mxu0 %v400
        %v439 = vpop.f32.mrb[0].mxu0
        %v440 = vadd.f32 0.0, %v439
        %v441 = vpop.f32.mrb[0].mxu0
        %v442 = vpop.f32.mrb[0].mxu0
        %v443 = vpop.f32.mrb[0].mxu0
        %444 = vdwg.mxu0
        %v446 = vsel %vm177, %v286, 0
        %v449 = vsel %vm242, %v168, 0
        %451 = vmatprep.subr.bf16.mxu0 0
        %452 = vmatpush1.bf16.msra.mxu0 %v449
        %453 = vmatprep.subr.bf16.mxu0 0
        %454 = vmatpush1.bf16.msra.mxu0 0
        %455 = vmatprep.subr.bf16.mxu0 0
        %456 = vmatpush1.bf16.msra.mxu0 0
        %457 = vmatprep.subr.bf16.mxu0 0
        %458 = vmatpush1.bf16.msra.mxu0 0
        %459 = vmatprep.subr.bf16.mxu0 0
        %460 = vmatpush1.bf16.msra.mxu0 0
        %461 = vmatprep.subr.bf16.mxu0 0
        %462 = vmatpush1.bf16.msra.mxu0 0
        %463 = vmatprep.subr.bf16.mxu0 0
        %464 = vmatpush1.bf16.msra.mxu0 0
        %465 = vmatprep.subr.bf16.mxu0 0
        %466 = vmatpush1.bf16.msra.mxu0 0
        %467 = vmatprep.subr.bf16.mxu0 0
        %468 = vmatpush1.bf16.msra.mxu0 0
        %469 = vmatprep.subr.bf16.mxu0 0
        %470 = vmatpush1.bf16.msra.mxu0 0
        %471 = vmatprep.subr.bf16.mxu0 0
        %472 = vmatpush1.bf16.msra.mxu0 0
        %473 = vmatprep.subr.bf16.mxu0 0
        %474 = vmatpush1.bf16.msra.mxu0 0
        %475 = vmatprep.subr.bf16.mxu0 0
        %476 = vmatpush1.bf16.msra.mxu0 0
        %477 = vmatprep.subr.bf16.mxu0 0
        %478 = vmatpush1.bf16.msra.mxu0 0
        %479 = vmatprep.subr.bf16.mxu0 0
        %480 = vmatpush1.bf16.msra.mxu0 0
        %481 = vmatprep.subr.bf16.mxu0 0
        %482 = vmatpush1.bf16.msra.mxu0 0
        %483 = vmatprep.mubr.bf16.mxu0 0
        %484 = vmatmul.mubr.bf16.gmra.mrb[0].mxu0 %v446
        %v485 = vpop.f32.mrb[0].mxu0
        %v486 = vadd.f32 %v440, %v485
        %v487 = vpop.f32.mrb[0].mxu0
        %v488 = vpop.f32.mrb[0].mxu0
        %v489 = vpop.f32.mrb[0].mxu0
        %490 = vdwg.mxu0
        %491 = vrot.lane.b32.xlu0 %v174, 112
        %v492 = vpop.permute.xlu0 %491
        %493 = vrot.lane.b32.xlu0 %v174, 80
        %v494 = vpop.permute.xlu0 %493
        %v496 = vsel %vm177, %v492, 0
        %v499 = vsel %vm177, %v494, 0
        %501 = vmatprep.subr.bf16.mxu0 0
        %502 = vmatpush1.bf16.xpose.msra.mxu0 %v499
        %503 = vmatprep.subr.bf16.mxu0 0
        %504 = vmatpush1.bf16.xpose.msra.mxu0 0
        %505 = vmatprep.subr.bf16.mxu0 0
        %506 = vmatpush1.bf16.xpose.msra.mxu0 0
        %507 = vmatprep.subr.bf16.mxu0 0
        %508 = vmatpush1.bf16.xpose.msra.mxu0 0
        %509 = vmatprep.subr.bf16.mxu0 0
        %510 = vmatpush1.bf16.xpose.msra.mxu0 0
        %511 = vmatprep.subr.bf16.mxu0 0
        %512 = vmatpush1.bf16.xpose.msra.mxu0 0
        %513 = vmatprep.subr.bf16.mxu0 0
        %514 = vmatpush1.bf16.xpose.msra.mxu0 0
        %515 = vmatprep.subr.bf16.mxu0 0
        %516 = vmatpush1.bf16.xpose.msra.mxu0 0
        %517 = vmatprep.subr.bf16.mxu0 0
        %518 = vmatpush1.bf16.xpose.msra.mxu0 0
        %519 = vmatprep.subr.bf16.mxu0 0
        %520 = vmatpush1.bf16.xpose.msra.mxu0 0
        %521 = vmatprep.subr.bf16.mxu0 0
        %522 = vmatpush1.bf16.xpose.msra.mxu0 0
        %523 = vmatprep.subr.bf16.mxu0 0
        %524 = vmatpush1.bf16.xpose.msra.mxu0 0
        %525 = vmatprep.subr.bf16.mxu0 0
        %526 = vmatpush1.bf16.xpose.msra.mxu0 0
        %527 = vmatprep.subr.bf16.mxu0 0
        %528 = vmatpush1.bf16.xpose.msra.mxu0 0
        %529 = vmatprep.subr.bf16.mxu0 0
        %530 = vmatpush1.bf16.xpose.msra.mxu0 0
        %531 = vmatprep.subr.bf16.mxu0 0
        %532 = vmatpush1.bf16.xpose.msra.mxu0 0
        %533 = vmatprep.mubr.bf16.mxu0 0
        %534 = vmatmul.mubr.bf16.gmra.mrb[0].mxu0 %v496
        %v535 = vpop.f32.mrb[0].mxu0
        %v536 = vadd.f32 0.0, %v535
        %v537 = vpop.f32.mrb[0].mxu0
        %v538 = vpop.f32.mrb[0].mxu0
        %v539 = vpop.f32.mrb[0].mxu0
        %540 = vdwg.mxu0
        %v541 = vmul.f32 %v536, 0.35355338
        %v542 = vsel %vm177, %v541, -inf
        %543 = vmax.xlane.f32.xlu0 %v542
        %v544 = vpop.xlane.xlu0 %543
        %v545 = vsub.f32 %v541, %v544
        %v546 = vmul.f32 %v545, 1.442695
        %v547 = vpow.pop %v546
        %v548 = vsel %vm177, %v547, 0.0
        %549 = vadd.xlane.f32.xlu0 %v548
        %v550 = vpop.xlane.xlu0 %549
        %v551 = vrcp.pop %v550
        %v552 = vmul.f32 %v547, %v551
        %v553 = vpack.c.bf16 %v552, %v552
        %554 = vrot.lane.b32.xlu0 %v174, 48
        %v555 = vpop.permute.xlu0 %554
        %v557 = vsel %vm177, %v553, 0
        %v560 = vsel %vm242, %v555, 0
        %562 = vmatprep.subr.bf16.mxu0 0
        %563 = vmatpush1.bf16.msra.mxu0 %v560
        %564 = vmatprep.subr.bf16.mxu0 0
        %565 = vmatpush1.bf16.msra.mxu0 0
        %566 = vmatprep.subr.bf16.mxu0 0
        %567 = vmatpush1.bf16.msra.mxu0 0
        %568 = vmatprep.subr.bf16.mxu0 0
        %569 = vmatpush1.bf16.msra.mxu0 0
        %570 = vmatprep.subr.bf16.mxu0 0
        %571 = vmatpush1.bf16.msra.mxu0 0
        %572 = vmatprep.subr.bf16.mxu0 0
        %573 = vmatpush1.bf16.msra.mxu0 0
        %574 = vmatprep.subr.bf16.mxu0 0
        %575 = vmatpush1.bf16.msra.mxu0 0
        %576 = vmatprep.subr.bf16.mxu0 0
        %577 = vmatpush1.bf16.msra.mxu0 0
        %578 = vmatprep.subr.bf16.mxu0 0
        %579 = vmatpush1.bf16.msra.mxu0 0
        %580 = vmatprep.subr.bf16.mxu0 0
        %581 = vmatpush1.bf16.msra.mxu0 0
        %582 = vmatprep.subr.bf16.mxu0 0
        %583 = vmatpush1.bf16.msra.mxu0 0
        %584 = vmatprep.subr.bf16.mxu0 0
        %585 = vmatpush1.bf16.msra.mxu0 0
        %586 = vmatprep.subr.bf16.mxu0 0
        %587 = vmatpush1.bf16.msra.mxu0 0
        %588 = vmatprep.subr.bf16.mxu0 0
        %589 = vmatpush1.bf16.msra.mxu0 0
        %590 = vmatprep.subr.bf16.mxu0 0
        %591 = vmatpush1.bf16.msra.mxu0 0
        %592 = vmatprep.subr.bf16.mxu0 0
        %593 = vmatpush1.bf16.msra.mxu0 0
        %594 = vmatprep.mubr.bf16.mxu0 0
        %595 = vmatmul.mubr.bf16.gmra.mrb[0].mxu0 %v557
        %v596 = vpop.f32.mrb[0].mxu0
        %v597 = vadd.f32 0.0, %v596
        %v598 = vpop.f32.mrb[0].mxu0
        %v599 = vpop.f32.mrb[0].mxu0
        %v600 = vpop.f32.mrb[0].mxu0
        %601 = vdwg.mxu0
        %v602 = vpack.c.bf16 %v597, %v597
        %v604 = vsel %vm177, %v602, 0
        %v607 = vsel %vm242, %v170, 0
        %609 = vmatprep.subr.bf16.mxu0 0
        %610 = vmatpush1.bf16.msra.mxu0 %v607
        %611 = vmatprep.subr.bf16.mxu0 0
        %612 = vmatpush1.bf16.msra.mxu0 0
        %613 = vmatprep.subr.bf16.mxu0 0
        %614 = vmatpush1.bf16.msra.mxu0 0
        %615 = vmatprep.subr.bf16.mxu0 0
        %616 = vmatpush1.bf16.msra.mxu0 0
        %617 = vmatprep.subr.bf16.mxu0 0
        %618 = vmatpush1.bf16.msra.mxu0 0
        %619 = vmatprep.subr.bf16.mxu0 0
        %620 = vmatpush1.bf16.msra.mxu0 0
        %621 = vmatprep.subr.bf16.mxu0 0
        %622 = vmatpush1.bf16.msra.mxu0 0
        %623 = vmatprep.subr.bf16.mxu0 0
        %624 = vmatpush1.bf16.msra.mxu0 0
        %625 = vmatprep.subr.bf16.mxu0 0
        %626 = vmatpush1.bf16.msra.mxu0 0
        %627 = vmatprep.subr.bf16.mxu0 0
        %628 = vmatpush1.bf16.msra.mxu0 0
        %629 = vmatprep.subr.bf16.mxu0 0
        %630 = vmatpush1.bf16.msra.mxu0 0
        %631 = vmatprep.subr.bf16.mxu0 0
        %632 = vmatpush1.bf16.msra.mxu0 0
        %633 = vmatprep.subr.bf16.mxu0 0
        %634 = vmatpush1.bf16.msra.mxu0 0
        %635 = vmatprep.subr.bf16.mxu0 0
        %636 = vmatpush1.bf16.msra.mxu0 0
        %637 = vmatprep.subr.bf16.mxu0 0
        %638 = vmatpush1.bf16.msra.mxu0 0
        %639 = vmatprep.subr.bf16.mxu0 0
        %640 = vmatpush1.bf16.msra.mxu0 0
        %641 = vmatprep.mubr.bf16.mxu0 0
        %642 = vmatmul.mubr.bf16.gmra.mrb[0].mxu0 %v604
        %v643 = vpop.f32.mrb[0].mxu0
        %v644 = vadd.f32 0.0, %v643
        %v645 = vpop.f32.mrb[0].mxu0
        %v646 = vpop.f32.mrb[0].mxu0
        %v647 = vpop.f32.mrb[0].mxu0
        %648 = vdwg.mxu0
        %v649 = vadd.f32 %v486, %v644
        %650 = vrot.lane.b32.xlu0 %v174, 104
        %v651 = vpop.permute.xlu0 %650
        %652 = vrot.lane.b32.xlu0 %v174, 72
        %v653 = vpop.permute.xlu0 %652
        %v655 = vsel %vm177, %v651, 0
        %v658 = vsel %vm177, %v653, 0
        %660 = vmatprep.subr.bf16.mxu0 0
        %661 = vmatpush1.bf16.xpose.msra.mxu0 %v658
        %662 = vmatprep.subr.bf16.mxu0 0
        %663 = vmatpush1.bf16.xpose.msra.mxu0 0
        %664 = vmatprep.subr.bf16.mxu0 0
        %665 = vmatpush1.bf16.xpose.msra.mxu0 0
        %666 = vmatprep.subr.bf16.mxu0 0
        %667 = vmatpush1.bf16.xpose.msra.mxu0 0
        %668 = vmatprep.subr.bf16.mxu0 0
        %669 = vmatpush1.bf16.xpose.msra.mxu0 0
        %670 = vmatprep.subr.bf16.mxu0 0
        %671 = vmatpush1.bf16.xpose.msra.mxu0 0
        %672 = vmatprep.subr.bf16.mxu0 0
        %673 = vmatpush1.bf16.xpose.msra.mxu0 0
        %674 = vmatprep.subr.bf16.mxu0 0
        %675 = vmatpush1.bf16.xpose.msra.mxu0 0
        %676 = vmatprep.subr.bf16.mxu0 0
        %677 = vmatpush1.bf16.xpose.msra.mxu0 0
        %678 = vmatprep.subr.bf16.mxu0 0
        %679 = vmatpush1.bf16.xpose.msra.mxu0 0
        %680 = vmatprep.subr.bf16.mxu0 0
        %681 = vmatpush1.bf16.xpose.msra.mxu0 0
        %682 = vmatprep.subr.bf16.mxu0 0
        %683 = vmatpush1.bf16.xpose.msra.mxu0 0
        %684 = vmatprep.subr.bf16.mxu0 0
        %685 = vmatpush1.bf16.xpose.msra.mxu0 0
        %686 = vmatprep.subr.bf16.mxu0 0
        %687 = vmatpush1.bf16.xpose.msra.mxu0 0
        %688 = vmatprep.subr.bf16.mxu0 0
        %689 = vmatpush1.bf16.xpose.msra.mxu0 0
        %690 = vmatprep.subr.bf16.mxu0 0
        %691 = vmatpush1.bf16.xpose.msra.mxu0 0
        %692 = vmatprep.mubr.bf16.mxu0 0
        %693 = vmatmul.mubr.bf16.gmra.mrb[0].mxu0 %v655
        %v694 = vpop.f32.mrb[0].mxu0
        %v695 = vadd.f32 0.0, %v694
        %v696 = vpop.f32.mrb[0].mxu0
        %v697 = vpop.f32.mrb[0].mxu0
        %v698 = vpop.f32.mrb[0].mxu0
        %699 = vdwg.mxu0
        %v700 = vmul.f32 %v695, 0.35355338
        %v701 = vsel %vm177, %v700, -inf
        %702 = vmax.xlane.f32.xlu0 %v701
        %v703 = vpop.xlane.xlu0 %702
        %v704 = vsub.f32 %v700, %v703
        %v705 = vmul.f32 %v704, 1.442695
        %v706 = vpow.pop %v705
        %v707 = vsel %vm177, %v706, 0.0
        %708 = vadd.xlane.f32.xlu0 %v707
        %v709 = vpop.xlane.xlu0 %708
        %v710 = vrcp.pop %v709
        %v711 = vmul.f32 %v706, %v710
        %v712 = vpack.c.bf16 %v711, %v711
        %713 = vrot.lane.b32.xlu0 %v174, 40
        %v714 = vpop.permute.xlu0 %713
        %v716 = vsel %vm177, %v712, 0
        %v719 = vsel %vm242, %v714, 0
        %721 = vmatprep.subr.bf16.mxu0 0
        %722 = vmatpush1.bf16.msra.mxu0 %v719
        %723 = vmatprep.subr.bf16.mxu0 0
        %724 = vmatpush1.bf16.msra.mxu0 0
        %725 = vmatprep.subr.bf16.mxu0 0
        %726 = vmatpush1.bf16.msra.mxu0 0
        %727 = vmatprep.subr.bf16.mxu0 0
        %728 = vmatpush1.bf16.msra.mxu0 0
        %729 = vmatprep.subr.bf16.mxu0 0
        %730 = vmatpush1.bf16.msra.mxu0 0
        %731 = vmatprep.subr.bf16.mxu0 0
        %732 = vmatpush1.bf16.msra.mxu0 0
        %733 = vmatprep.subr.bf16.mxu0 0
        %734 = vmatpush1.bf16.msra.mxu0 0
        %735 = vmatprep.subr.bf16.mxu0 0
        %736 = vmatpush1.bf16.msra.mxu0 0
        %737 = vmatprep.subr.bf16.mxu0 0
        %738 = vmatpush1.bf16.msra.mxu0 0
        %739 = vmatprep.subr.bf16.mxu0 0
        %740 = vmatpush1.bf16.msra.mxu0 0
        %741 = vmatprep.subr.bf16.mxu0 0
        %742 = vmatpush1.bf16.msra.mxu0 0
        %743 = vmatprep.subr.bf16.mxu0 0
        %744 = vmatpush1.bf16.msra.mxu0 0
        %745 = vmatprep.subr.bf16.mxu0 0
        %746 = vmatpush1.bf16.msra.mxu0 0
        %747 = vmatprep.subr.bf16.mxu0 0
        %748 = vmatpush1.bf16.msra.mxu0 0
        %749 = vmatprep.subr.bf16.mxu0 0
        %750 = vmatpush1.bf16.msra.mxu0 0
        %751 = vmatprep.subr.bf16.mxu0 0
        %752 = vmatpush1.bf16.msra.mxu0 0
        %753 = vmatprep.mubr.bf16.mxu0 0
        %754 = vmatmul.mubr.bf16.gmra.mrb[0].mxu0 %v716
        %v755 = vpop.f32.mrb[0].mxu0
        %v756 = vadd.f32 0.0, %v755
        %v757 = vpop.f32.mrb[0].mxu0
        %v758 = vpop.f32.mrb[0].mxu0
        %v759 = vpop.f32.mrb[0].mxu0
        %760 = vdwg.mxu0
        %v761 = vpack.c.bf16 %v756, %v756
        %v763 = vsel %vm177, %v761, 0
        %v766 = vsel %vm242, %v171, 0
        %768 = vmatprep.subr.bf16.mxu0 0
        %769 = vmatpush1.bf16.msra.mxu0 %v766
        %770 = vmatprep.subr.bf16.mxu0 0
        %771 = vmatpush1.bf16.msra.mxu0 0
        %772 = vmatprep.subr.bf16.mxu0 0
        %773 = vmatpush1.bf16.msra.mxu0 0
        %774 = vmatprep.subr.bf16.mxu0 0
        %775 = vmatpush1.bf16.msra.mxu0 0
        %776 = vmatprep.subr.bf16.mxu0 0
        %777 = vmatpush1.bf16.msra.mxu0 0
        %778 = vmatprep.subr.bf16.mxu0 0
        %779 = vmatpush1.bf16.msra.mxu0 0
        %780 = vmatprep.subr.bf16.mxu0 0
        %781 = vmatpush1.bf16.msra.mxu0 0
        %782 = vmatprep.subr.bf16.mxu0 0
        %783 = vmatpush1.bf16.msra.mxu0 0
        %784 = vmatprep.subr.bf16.mxu0 0
        %785 = vmatpush1.bf16.msra.mxu0 0
        %786 = vmatprep.subr.bf16.mxu0 0
        %787 = vmatpush1.bf16.msra.mxu0 0
        %788 = vmatprep.subr.bf16.mxu0 0
        %789 = vmatpush1.bf16.msra.mxu0 0
        %790 = vmatprep.subr.bf16.mxu0 0
        %791 = vmatpush1.bf16.msra.mxu0 0
        %792 = vmatprep.subr.bf16.mxu0 0
        %793 = vmatpush1.bf16.msra.mxu0 0
        %794 = vmatprep.subr.bf16.mxu0 0
        %795 = vmatpush1.bf16.msra.mxu0 0
        %796 = vmatprep.subr.bf16.mxu0 0
        %797 = vmatpush1.bf16.msra.mxu0 0
        %798 = vmatprep.subr.bf16.mxu0 0
        %799 = vmatpush1.bf16.msra.mxu0 0
        %800 = vmatprep.mubr.bf16.mxu0 0
        %801 = vmatmul.mubr.bf16.gmra.mrb[0].mxu0 %v763
        %v802 = vpop.f32.mrb[0].mxu0
        %v803 = vadd.f32 0.0, %v802
        %v804 = vpop.f32.mrb[0].mxu0
        %v805 = vpop.f32.mrb[0].mxu0
        %v806 = vpop.f32.mrb[0].mxu0
        %807 = vdwg.mxu0
        %v808 = vadd.f32 %v649, %v803
        %v809 = vld [vmem:[%s2] sm:$0x1]
        %v811 = vlaneseq
        %v812 = vshrl.u32 %v811, 7
        %v813 = vsub.s32 0, %v812
        %v814 = vrot.slane %v809, %v813
        %v816 = vadd.f32 %v808, %v814
        %vm817 = vcmask 261120
        %818 = vst.msk [vmem:[%s161] sm:$0xff] %vm817, %v816
        %s819 = sand.u32 %s93, 1
        %s820 = scalar_lea.sflag [#allocation3], %s819
        %s821 = sand.u32 %s93, 1
        %s822 = smul.addr %s821, 8
        %s823 = scalar_lea.vmem [#allocation2], %s822
        // Predicated region
        $region33: #{graph_attention_forward.3} parent=31 // pred_check
          %p824 = pneg %p103
        $region34: #{graph_attention_forward.3} parent=31 // pred_check_branch
          %826 = sbr.rel (%p824) target = $region36
        $region35: #{graph_attention_forward.3} parent=31 // pred_region
          %s828 = ssub.s32 128, 128
          %829 = vsyncadd %s820, %s828
          %s830 = smul.addr %s17, 128
          %s831 = scalar_lea.hbm %s3, %s830
          %s833 = sshll.u32 %s823, 4
          %s834 = int_to_ptr.vmem [resolvable:$true] %s833
          %836 = dma.vmem_to_hbm [thread:$0]  %s834, 128, %s831, %s820
        $region36: #{graph_attention_forward.3} parent=31 // pred_fallthru
          _
      $region32: #{graph_attention_forward.3} parent=5 // pred_fallthru
        _
      %p837 = scmp.le.s32.totalorder 2, %s12
      // Predicated region
      $region37: #{graph_attention_forward.3} parent=5 // pred_check
        %p838 = pneg %p837
      $region38: #{graph_attention_forward.3} parent=5 // pred_check_branch
        %840 = sbr.rel (%p838) target = $region40
      $region39: #{graph_attention_forward.3} parent=5 // pred_region
        %s841 = ssub.s32 %s12, 2
        // Predicated region
        $region41: #{graph_attention_forward.3} parent=39 // pred_check
          %p842 = pneg %p109
        $region42: #{graph_attention_forward.3} parent=39 // pred_check_branch
          %844 = sbr.rel (%p842) target = $region44
        $region43: #{graph_attention_forward.3} parent=39 // pred_region
          %s845 = sand.u32 %s94, 1
          %s846 = scalar_lea.sflag [#allocation3], %s845
          %s847 = sand.u32 %s94, 1
          %s848 = smul.addr %s847, 8
          %s849 = scalar_lea.vmem [#allocation2], %s848
          %850 = dma.done %s846, 128
        $region44: #{graph_attention_forward.3} parent=39 // pred_fallthru
          _
      $region40: #{graph_attention_forward.3} parent=5 // pred_fallthru
        _
    $region6: #{graph_attention_forward.3} parent=1 // loop_footer
      %s16 = sadd.s32 1, %s12
    $region7: #{graph_attention_forward.3} parent=1 // loop_footer_branch
      %11 = sbr.rel target = $region3
    $region8: #{graph_attention_forward.3} parent=1 // loop_exit
      _
    %851 = vsyncpa [#allocation3], 1
    %s852 = scalar_lea.sflag [#allocation3], 1
    %853 = vsyncpa %s852, 1

</llo_original>
